<compile_context>
chip_gen: v5e
topology: v5e:2x2
jax: 0.10.0
libtpu: 0.0.40
codegen_flags: <defaults>
</compile_context>

<pallas_src>
import jax
import jax.numpy as jnp
from jax.experimental import pallas as pl
from jax.experimental.pallas import tpu as pltpu

_MEAN = (0.485, 0.456, 0.406)
_STD = (0.229, 0.224, 0.225)


def _aug_kernel(x_ref, wwt_ref, wh_ref, p_ref, o_ref):
    """One block of G images per grid step.

    x_ref   : (G, C, H, W)   f32/bf16  input images (natural layout)
    wwt_ref : (G, W, OW)     bf16      column (crop+resize) interp, pre-transposed
    wh_ref  : (G, OH, H)     bf16      row (crop+resize) interp
    p_ref   : (G, C, 3, OW)  f32       fused epilogue params [scale, bias, floor]
    o_ref   : (G, C, OH, OW) bf16      output
    """
    wwt = wwt_ref[...]                       # loaded once, reused for all channels
    wh = wh_ref[...]
    num_c = x_ref.shape[1]

    # Static 3-iteration channel loop; every matmul is a clean rank-3 batched
    # einsum (batch = image index), no zero-padding, no block-diagonal weights.
    for c in range(num_c):
        xc = x_ref[:, c, :, :].astype(jnp.bfloat16)                 # (G, H, W)
        t = jnp.einsum('ghw,gwo->gho', xc, wwt,
                       preferred_element_type=jnp.float32)          # (G, H, OW)
        y = jnp.einsum('goh,ghw->gow', wh, t.astype(jnp.bfloat16),
                       preferred_element_type=jnp.float32)          # (G, OH, OW)

        # Brightness(p=0.7, -0.5 add, clamp) + Contrast(p=0.7, x0.5, clamp)
        # + Normalize fold exactly into:  out = max(y*scale + bias, floor)
        pc = p_ref[:, c, :, :]                                      # (G, 3, OW)
        scale = pc[:, 0:1, :]                                       # (G, 1, OW)
        bias = pc[:, 1:2, :]
        floor = pc[:, 2:3, :]
        o_ref[:, c, :, :] = jnp.maximum(y * scale + bias, floor).astype(o_ref.dtype)


def _interp_matrix(start, crop_len, in_size, out_size, transposed):
    """Per-image bilinear crop+resize weights (align_corners-style crop mapping).

    Output sample i reads source coordinate start + i*(crop_len-1)/(out_size-1).
    Returns (B, out_size, in_size) if not transposed, else (B, in_size, out_size).
    """
    denom = float(max(out_size - 1, 1))
    i = jnp.arange(out_size, dtype=jnp.float32)
    src = start[:, None] + i[None, :] * (crop_len[:, None] - 1.0) / denom      # (B, O)
    src = jnp.clip(src, 0.0, float(in_size - 1))
    lo = jnp.floor(src)
    hi = jnp.minimum(lo + 1.0, float(in_size - 1))
    frac = src - lo
    j = jnp.arange(in_size, dtype=jnp.float32)
    if transposed:
        w = ((j[None, :, None] == lo[:, None, :]).astype(jnp.float32) * (1.0 - frac)[:, None, :]
             + (j[None, :, None] == hi[:, None, :]).astype(jnp.float32) * frac[:, None, :])
    else:
        w = ((j[None, None, :] == lo[:, :, None]).astype(jnp.float32) * (1.0 - frac)[:, :, None]
             + (j[None, None, :] == hi[:, :, None]).astype(jnp.float32) * frac[:, :, None])
    return w


def _vmem_bytes_per_image(C, H, W, OH, OW, x_bytes, out_bytes):
    """Conservative VMEM cost of one image inside a kernel block."""
    io = (C * H * W * x_bytes        # image block
          + W * OW * 2               # column interp (bf16)
          + OH * H * 2               # row interp (bf16)
          + C * 3 * OW * 4           # epilogue params (f32)
          + C * OH * OW * out_bytes) # output block
    io *= 2                          # Pallas double-buffers pipelined blocks
    # worst case: all per-channel temporaries live at once
    tmp = C * (H * W * 2             # bf16 cast of the channel slab
               + H * OW * (4 + 2)    # width-pass result (f32) + bf16 copy
               + OH * OW * 4)        # height-pass result (f32)
    return io + tmp


def best_combine_augmentation(x, key, image_size=224, out_dtype=jnp.bfloat16,
                              vmem_limit_bytes=None):
    """x: (B, 3, H, W) float in [0, 1]. Returns (B, 3, image_size, image_size)."""
    B, C, H, W = x.shape
    assert C == 3, "ImageNet normalization implies 3 channels"
    OH = OW = int(image_size)

    if not jnp.issubdtype(x.dtype, jnp.floating):
        x = x.astype(jnp.float32)

    k_area, k_ratio, k_y0, k_x0, k_b, k_c = jax.random.split(key, 6)

    # ---- RandomResizedCrop(scale=(0.3, 0.9), ratio=(3/4, 4/3)) parameters ----
    area = jax.random.uniform(k_area, (B,), minval=0.3, maxval=0.9) * float(H * W)
    log_ratio = jax.random.uniform(k_ratio, (B,),
                                   minval=jnp.log(3.0 / 4.0), maxval=jnp.log(4.0 / 3.0))
    ratio = jnp.exp(log_ratio)
    crop_h = jnp.clip(jnp.sqrt(area / ratio), 1.0, float(H))   # hard clip (no rejection)
    crop_w = jnp.clip(jnp.sqrt(area * ratio), 1.0, float(W))
    y0 = jax.random.uniform(k_y0, (B,)) * (float(H) - crop_h)
    x0 = jax.random.uniform(k_x0, (B,)) * (float(W) - crop_w)

    wh = _interp_matrix(y0, crop_h, H, OH, transposed=False).astype(jnp.bfloat16)   # (B, OH, H)
    wwt = _interp_matrix(x0, crop_w, W, OW, transposed=True).astype(jnp.bfloat16)   # (B, W, OW)

    # ---- p=0.7 apply flags folded with normalization into FMA + max params ----
    bflag = jax.random.bernoulli(k_b, 0.7, (B,))
    cflag = jax.random.bernoulli(k_c, 0.7, (B,))
    badd = jnp.where(bflag, -0.5, 0.0).astype(jnp.float32)   # Kornia additive brightness (factor-1)
    cmul = jnp.where(cflag, 0.5, 1.0).astype(jnp.float32)    # multiplicative contrast
    mean = jnp.asarray(_MEAN, jnp.float32)
    inv_std = 1.0 / jnp.asarray(_STD, jnp.float32)
    scale_bc = cmul[:, None] * inv_std[None, :]               # (B, C)
    floor_c = -mean * inv_std                                 # (C,)  lower bound of max()
    bias_bc = badd[:, None] * scale_bc + floor_c[None, :]     # (B, C)
    floor_bc = jnp.broadcast_to(floor_c[None, :], (B, C))
    params = jnp.stack([scale_bc, bias_bc, floor_bc], axis=2)                 # (B, C, 3)
    params = jnp.broadcast_to(params[..., None], (B, C, 3, OW)).astype(jnp.float32)

    # ---- VMEM-aware block size G and grid ----
    if vmem_limit_bytes is None:
        try:
            cap = int(getattr(pltpu.get_tpu_info(), "vmem_capacity_bytes"))
        except Exception:
            cap = 64 * 1024 * 1024          # v7x per-TC VMEM (smallest current gen)
        vmem_limit_bytes = min(cap * 3 // 4, 100 * 1024 * 1024)   # ~48 MiB v7x, ~96 MiB v5e/v6e
    budget = vmem_limit_bytes * 3 // 4

    per_img = _vmem_bytes_per_image(C, H, W, OH, OW,
                                    x_bytes=x.dtype.itemsize,
                                    out_bytes=jnp.dtype(out_dtype).itemsize)
    G = int(max(1, min(B, budget // per_img)))
    if G >= B and B >= 2:
        G = (B + 1) // 2                    # keep >= 2 grid steps (v7x megacore)
    nb = -(-B // G)
    Bp = nb * G
    if Bp != B:
        pad_b = Bp - B
        x = jnp.pad(x, ((0, pad_b), (0, 0), (0, 0), (0, 0)))
        wh = jnp.pad(wh, ((0, pad_b), (0, 0), (0, 0)))
        wwt = jnp.pad(wwt, ((0, pad_b), (0, 0), (0, 0)))
        params = jnp.pad(params, ((0, pad_b), (0, 0), (0, 0), (0, 0)))

    out = pl.pallas_call(
        _aug_kernel,
        out_shape=jax.ShapeDtypeStruct((Bp, C, OH, OW), out_dtype),
        grid=(nb,),
        in_specs=[
            pl.BlockSpec((G, C, H, W), lambda i: (i, 0, 0, 0)),     # images (natural layout)
            pl.BlockSpec((G, W, OW), lambda i: (i, 0, 0)),          # column interp (transposed)
            pl.BlockSpec((G, OH, H), lambda i: (i, 0, 0)),          # row interp
            pl.BlockSpec((G, C, 3, OW), lambda i: (i, 0, 0, 0)),    # fused epilogue params
        ],
        out_specs=pl.BlockSpec((G, C, OH, OW), lambda i: (i, 0, 0, 0)),
        compiler_params=pltpu.CompilerParams(
            dimension_semantics=("parallel",),
            vmem_limit_bytes=int(vmem_limit_bytes)),
    )(x, wwt, wh, params)

    return out[:B] if Bp != B else out


if __name__ == "__main__":
    key = jax.random.PRNGKey(0)
    k_img, k_aug = jax.random.split(key)

    B, C, H, W = 2, 3, 16, 16
    x = jax.random.uniform(k_img, (B, C, H, W), dtype=jnp.float32)   # images in [0, 1]

    out = best_combine_augmentation(x, k_aug, image_size=16)
    jax.block_until_ready(out)

    assert out.shape == (B, C, 16, 16)
    assert out.dtype == jnp.bfloat16
    assert bool(jnp.all(jnp.isfinite(out.astype(jnp.float32))))
    print("KERNEL_OK")
</pallas_src>

<mosaic_0001>
module attributes {stable_mosaic.version = 11 : i64} {
  func.func @_aug_kernel(%arg0: i32, %arg1: memref<1x3x16x16xf32, #tpu.memory_space<vmem>>, %arg2: memref<1x16x16xbf16, #tpu.memory_space<vmem>>, %arg3: memref<1x16x16xbf16, #tpu.memory_space<vmem>>, %arg4: memref<1x3x3x16xf32, #tpu.memory_space<vmem>>, %arg5: memref<1x3x16x16xbf16, #tpu.memory_space<vmem>>) attributes {dimension_semantics = [#tpu.dimension_semantics<parallel>], iteration_bounds = array<i64: 2>, scalar_prefetch = 0 : i64, scratch_operands = 0 : i64, tpu.core_type = #tpu.core_type<tc>, window_params = [{transform_indices = @transform_0, window_bounds = array<i64: 1, 3, 16, 16>}, {transform_indices = @transform_1, window_bounds = array<i64: 1, 16, 16>}, {transform_indices = @transform_2, window_bounds = array<i64: 1, 16, 16>}, {transform_indices = @transform_3, window_bounds = array<i64: 1, 3, 3, 16>}, {transform_indices = @transform_4, window_bounds = array<i64: 1, 3, 16, 16>}]} {
    %c0 = arith.constant 0 : index
    %c0_0 = arith.constant 0 : index
    %c0_1 = arith.constant 0 : index
    %0 = vector.load %arg2[%c0, %c0_0, %c0_1] : memref<1x16x16xbf16, #tpu.memory_space<vmem>>, vector<1x16x16xbf16>
    %c0_2 = arith.constant 0 : index
    %c0_3 = arith.constant 0 : index
    %c0_4 = arith.constant 0 : index
    %1 = vector.load %arg3[%c0_2, %c0_3, %c0_4] : memref<1x16x16xbf16, #tpu.memory_space<vmem>>, vector<1x16x16xbf16>
    %c0_5 = arith.constant 0 : index
    %c0_6 = arith.constant 0 : index
    %c0_7 = arith.constant 0 : index
    %c0_8 = arith.constant 0 : index
    %2 = vector.load %arg1[%c0_5, %c0_6, %c0_7, %c0_8] : memref<1x3x16x16xf32, #tpu.memory_space<vmem>>, vector<1x1x16x16xf32>
    %3 = vector.shape_cast %2 : vector<1x1x16x16xf32> to vector<1x16x16xf32>
    %4 = arith.truncf %3 : vector<1x16x16xf32> to vector<1x16x16xbf16>
    "tpu.trace_start"() <{level = 10 : i32, message = "ghw,gwo->gho"}> : () -> ()
    %cst = arith.constant dense<0.000000e+00> : vector<1x16x16xf32>
    %5 = tpu.matmul %4, %0, %cst {dimension_numbers = #tpu.dot_dimension_numbers<[2], [1], [1], [2], [0, 0, 0, 1, 1, 2], [0], [0]>} : vector<1x16x16xbf16>, vector<1x16x16xbf16>, vector<1x16x16xf32> -> vector<1x16x16xf32>
    "tpu.trace_stop"() : () -> ()
    %6 = arith.truncf %5 : vector<1x16x16xf32> to vector<1x16x16xbf16>
    "tpu.trace_start"() <{level = 10 : i32, message = "goh,ghw->gow"}> : () -> ()
    %cst_9 = arith.constant dense<0.000000e+00> : vector<1x16x16xf32>
    %7 = tpu.matmul %1, %6, %cst_9 {dimension_numbers = #tpu.dot_dimension_numbers<[2], [1], [1], [2], [0, 0, 0, 1, 1, 2], [0], [0]>} : vector<1x16x16xbf16>, vector<1x16x16xbf16>, vector<1x16x16xf32> -> vector<1x16x16xf32>
    "tpu.trace_stop"() : () -> ()
    %c0_10 = arith.constant 0 : index
    %c0_11 = arith.constant 0 : index
    %c0_12 = arith.constant 0 : index
    %c0_13 = arith.constant 0 : index
    %8 = vector.load %arg4[%c0_10, %c0_11, %c0_12, %c0_13] : memref<1x3x3x16xf32, #tpu.memory_space<vmem>>, vector<1x1x3x16xf32>
    %9 = vector.shape_cast %8 : vector<1x1x3x16xf32> to vector<1x3x16xf32>
    %10 = vector.extract_strided_slice %9 {offsets = [0, 0, 0], sizes = [1, 1, 16], strides = [1, 1, 1]} : vector<1x3x16xf32> to vector<1x1x16xf32>
    %11 = vector.extract_strided_slice %9 {offsets = [0, 1, 0], sizes = [1, 1, 16], strides = [1, 1, 1]} : vector<1x3x16xf32> to vector<1x1x16xf32>
    %12 = vector.extract_strided_slice %9 {offsets = [0, 2, 0], sizes = [1, 1, 16], strides = [1, 1, 1]} : vector<1x3x16xf32> to vector<1x1x16xf32>
    %13 = vector.broadcast %10 : vector<1x1x16xf32> to vector<1x16x16xf32>
    %14 = arith.mulf %7, %13 : vector<1x16x16xf32>
    %15 = vector.broadcast %11 : vector<1x1x16xf32> to vector<1x16x16xf32>
    %16 = arith.addf %14, %15 : vector<1x16x16xf32>
    %17 = vector.broadcast %12 : vector<1x1x16xf32> to vector<1x16x16xf32>
    %18 = arith.maximumf %16, %17 : vector<1x16x16xf32>
    %19 = arith.truncf %18 : vector<1x16x16xf32> to vector<1x16x16xbf16>
    %c0_14 = arith.constant 0 : index
    %c0_15 = arith.constant 0 : index
    %c0_16 = arith.constant 0 : index
    %c0_17 = arith.constant 0 : index
    %20 = vector.load %arg5[%c0_14, %c0_15, %c0_16, %c0_17] : memref<1x3x16x16xbf16, #tpu.memory_space<vmem>>, vector<1x1x16x16xbf16>
    %21 = vector.shape_cast %20 : vector<1x1x16x16xbf16> to vector<1x16x16xbf16>
    %22 = vector.shape_cast %19 : vector<1x16x16xbf16> to vector<1x1x16x16xbf16>
    tpu.vector_store %arg5[%c0_14, %c0_15, %c0_16, %c0_17], %22 {strides = array<i32>} : memref<1x3x16x16xbf16, #tpu.memory_space<vmem>>, vector<1x1x16x16xbf16>,
    %c0_18 = arith.constant 0 : index
    %c1 = arith.constant 1 : index
    %c0_19 = arith.constant 0 : index
    %c0_20 = arith.constant 0 : index
    %23 = vector.load %arg1[%c0_18, %c1, %c0_19, %c0_20] : memref<1x3x16x16xf32, #tpu.memory_space<vmem>>, vector<1x1x16x16xf32>
    %24 = vector.shape_cast %23 : vector<1x1x16x16xf32> to vector<1x16x16xf32>
    %25 = arith.truncf %24 : vector<1x16x16xf32> to vector<1x16x16xbf16>
    "tpu.trace_start"() <{level = 10 : i32, message = "ghw,gwo->gho"}> : () -> ()
    %cst_21 = arith.constant dense<0.000000e+00> : vector<1x16x16xf32>
    %26 = tpu.matmul %25, %0, %cst_21 {dimension_numbers = #tpu.dot_dimension_numbers<[2], [1], [1], [2], [0, 0, 0, 1, 1, 2], [0], [0]>} : vector<1x16x16xbf16>, vector<1x16x16xbf16>, vector<1x16x16xf32> -> vector<1x16x16xf32>
    "tpu.trace_stop"() : () -> ()
    %27 = arith.truncf %26 : vector<1x16x16xf32> to vector<1x16x16xbf16>
    "tpu.trace_start"() <{level = 10 : i32, message = "goh,ghw->gow"}> : () -> ()
    %cst_22 = arith.constant dense<0.000000e+00> : vector<1x16x16xf32>
    %28 = tpu.matmul %1, %27, %cst_22 {dimension_numbers = #tpu.dot_dimension_numbers<[2], [1], [1], [2], [0, 0, 0, 1, 1, 2], [0], [0]>} : vector<1x16x16xbf16>, vector<1x16x16xbf16>, vector<1x16x16xf32> -> vector<1x16x16xf32>
    "tpu.trace_stop"() : () -> ()
    %c0_23 = arith.constant 0 : index
    %c1_24 = arith.constant 1 : index
    %c0_25 = arith.constant 0 : index
    %c0_26 = arith.constant 0 : index
    %29 = vector.load %arg4[%c0_23, %c1_24, %c0_25, %c0_26] : memref<1x3x3x16xf32, #tpu.memory_space<vmem>>, vector<1x1x3x16xf32>
    %30 = vector.shape_cast %29 : vector<1x1x3x16xf32> to vector<1x3x16xf32>
    %31 = vector.extract_strided_slice %30 {offsets = [0, 0, 0], sizes = [1, 1, 16], strides = [1, 1, 1]} : vector<1x3x16xf32> to vector<1x1x16xf32>
    %32 = vector.extract_strided_slice %30 {offsets = [0, 1, 0], sizes = [1, 1, 16], strides = [1, 1, 1]} : vector<1x3x16xf32> to vector<1x1x16xf32>
    %33 = vector.extract_strided_slice %30 {offsets = [0, 2, 0], sizes = [1, 1, 16], strides = [1, 1, 1]} : vector<1x3x16xf32> to vector<1x1x16xf32>
    %34 = vector.broadcast %31 : vector<1x1x16xf32> to vector<1x16x16xf32>
    %35 = arith.mulf %28, %34 : vector<1x16x16xf32>
    %36 = vector.broadcast %32 : vector<1x1x16xf32> to vector<1x16x16xf32>
    %37 = arith.addf %35, %36 : vector<1x16x16xf32>
    %38 = vector.broadcast %33 : vector<1x1x16xf32> to vector<1x16x16xf32>
    %39 = arith.maximumf %37, %38 : vector<1x16x16xf32>
    %40 = arith.truncf %39 : vector<1x16x16xf32> to vector<1x16x16xbf16>
    %c0_27 = arith.constant 0 : index
    %c1_28 = arith.constant 1 : index
    %c0_29 = arith.constant 0 : index
    %c0_30 = arith.constant 0 : index
    %41 = vector.load %arg5[%c0_27, %c1_28, %c0_29, %c0_30] : memref<1x3x16x16xbf16, #tpu.memory_space<vmem>>, vector<1x1x16x16xbf16>
    %42 = vector.shape_cast %41 : vector<1x1x16x16xbf16> to vector<1x16x16xbf16>
    %43 = vector.shape_cast %40 : vector<1x16x16xbf16> to vector<1x1x16x16xbf16>
    tpu.vector_store %arg5[%c0_27, %c1_28, %c0_29, %c0_30], %43 {strides = array<i32>} : memref<1x3x16x16xbf16, #tpu.memory_space<vmem>>, vector<1x1x16x16xbf16>,
    %c0_31 = arith.constant 0 : index
    %c2 = arith.constant 2 : index
    %c0_32 = arith.constant 0 : index
    %c0_33 = arith.constant 0 : index
    %44 = vector.load %arg1[%c0_31, %c2, %c0_32, %c0_33] : memref<1x3x16x16xf32, #tpu.memory_space<vmem>>, vector<1x1x16x16xf32>
    %45 = vector.shape_cast %44 : vector<1x1x16x16xf32> to vector<1x16x16xf32>
    %46 = arith.truncf %45 : vector<1x16x16xf32> to vector<1x16x16xbf16>
    "tpu.trace_start"() <{level = 10 : i32, message = "ghw,gwo->gho"}> : () -> ()
    %cst_34 = arith.constant dense<0.000000e+00> : vector<1x16x16xf32>
    %47 = tpu.matmul %46, %0, %cst_34 {dimension_numbers = #tpu.dot_dimension_numbers<[2], [1], [1], [2], [0, 0, 0, 1, 1, 2], [0], [0]>} : vector<1x16x16xbf16>, vector<1x16x16xbf16>, vector<1x16x16xf32> -> vector<1x16x16xf32>
    "tpu.trace_stop"() : () -> ()
    %48 = arith.truncf %47 : vector<1x16x16xf32> to vector<1x16x16xbf16>
    "tpu.trace_start"() <{level = 10 : i32, message = "goh,ghw->gow"}> : () -> ()
    %cst_35 = arith.constant dense<0.000000e+00> : vector<1x16x16xf32>
    %49 = tpu.matmul %1, %48, %cst_35 {dimension_numbers = #tpu.dot_dimension_numbers<[2], [1], [1], [2], [0, 0, 0, 1, 1, 2], [0], [0]>} : vector<1x16x16xbf16>, vector<1x16x16xbf16>, vector<1x16x16xf32> -> vector<1x16x16xf32>
    "tpu.trace_stop"() : () -> ()
    %c0_36 = arith.constant 0 : index
    %c2_37 = arith.constant 2 : index
    %c0_38 = arith.constant 0 : index
    %c0_39 = arith.constant 0 : index
    %50 = vector.load %arg4[%c0_36, %c2_37, %c0_38, %c0_39] : memref<1x3x3x16xf32, #tpu.memory_space<vmem>>, vector<1x1x3x16xf32>
    %51 = vector.shape_cast %50 : vector<1x1x3x16xf32> to vector<1x3x16xf32>
    %52 = vector.extract_strided_slice %51 {offsets = [0, 0, 0], sizes = [1, 1, 16], strides = [1, 1, 1]} : vector<1x3x16xf32> to vector<1x1x16xf32>
    %53 = vector.extract_strided_slice %51 {offsets = [0, 1, 0], sizes = [1, 1, 16], strides = [1, 1, 1]} : vector<1x3x16xf32> to vector<1x1x16xf32>
    %54 = vector.extract_strided_slice %51 {offsets = [0, 2, 0], sizes = [1, 1, 16], strides = [1, 1, 1]} : vector<1x3x16xf32> to vector<1x1x16xf32>
    %55 = vector.broadcast %52 : vector<1x1x16xf32> to vector<1x16x16xf32>
    %56 = arith.mulf %49, %55 : vector<1x16x16xf32>
    %57 = vector.broadcast %53 : vector<1x1x16xf32> to vector<1x16x16xf32>
    %58 = arith.addf %56, %57 : vector<1x16x16xf32>
    %59 = vector.broadcast %54 : vector<1x1x16xf32> to vector<1x16x16xf32>
    %60 = arith.maximumf %58, %59 : vector<1x16x16xf32>
    %61 = arith.truncf %60 : vector<1x16x16xf32> to vector<1x16x16xbf16>
    %c0_40 = arith.constant 0 : index
    %c2_41 = arith.constant 2 : index
    %c0_42 = arith.constant 0 : index
    %c0_43 = arith.constant 0 : index
    %62 = vector.load %arg5[%c0_40, %c2_41, %c0_42, %c0_43] : memref<1x3x16x16xbf16, #tpu.memory_space<vmem>>, vector<1x1x16x16xbf16>
    %63 = vector.shape_cast %62 : vector<1x1x16x16xbf16> to vector<1x16x16xbf16>
    %64 = vector.shape_cast %61 : vector<1x16x16xbf16> to vector<1x1x16x16xbf16>
    tpu.vector_store %arg5[%c0_40, %c2_41, %c0_42, %c0_43], %64 {strides = array<i32>} : memref<1x3x16x16xbf16, #tpu.memory_space<vmem>>, vector<1x1x16x16xbf16>,
    return
  }
  func.func @transform_0(%arg0: i32) -> (i32, i32, i32, i32) {
    %c0_i32 = arith.constant 0 : i32
    %c0_i32_0 = arith.constant 0 : i32
    %c0_i32_1 = arith.constant 0 : i32
    %c0_i32_2 = arith.constant 0 : i32
    return %arg0, %c0_i32, %c0_i32_0, %c0_i32_1 : i32, i32, i32, i32
  }
  func.func @transform_1(%arg0: i32) -> (i32, i32, i32) {
    %c0_i32 = arith.constant 0 : i32
    %c0_i32_0 = arith.constant 0 : i32
    %c0_i32_1 = arith.constant 0 : i32
    return %arg0, %c0_i32, %c0_i32_0 : i32, i32, i32
  }
  func.func @transform_2(%arg0: i32) -> (i32, i32, i32) {
    %c0_i32 = arith.constant 0 : i32
    %c0_i32_0 = arith.constant 0 : i32
    %c0_i32_1 = arith.constant 0 : i32
    return %arg0, %c0_i32, %c0_i32_0 : i32, i32, i32
  }
  func.func @transform_3(%arg0: i32) -> (i32, i32, i32, i32) {
    %c0_i32 = arith.constant 0 : i32
    %c0_i32_0 = arith.constant 0 : i32
    %c0_i32_1 = arith.constant 0 : i32
    %c0_i32_2 = arith.constant 0 : i32
    return %arg0, %c0_i32, %c0_i32_0, %c0_i32_1 : i32, i32, i32, i32
  }
  func.func @transform_4(%arg0: i32) -> (i32, i32, i32, i32) {
    %c0_i32 = arith.constant 0 : i32
    %c0_i32_0 = arith.constant 0 : i32
    %c0_i32_1 = arith.constant 0 : i32
    %c0_i32_2 = arith.constant 0 : i32
    return %arg0, %c0_i32, %c0_i32_0, %c0_i32_1 : i32, i32, i32, i32
  }
}

</mosaic_0001>

<llo_original>
// kernel: tpu_custom_call.1
$region0: #{tpu_custom_call.1}
  #allocation0 [shape = 'u32[]', space=smem, size = 0x4, offset = 0x4, fixed_abs, tag = 'smem constant byte address 0x4 - core index']
  #allocation1 [shape = 'u32[72,128]{1,0:T(1,128)}', space=vmem, size = 0x9000, scoped, tag = 'internal scratch']
  %s0 = inlined_call_operand.hbm [shape: f32[2,3,16,16], index: 0, kind: input, shape index: {}]
  %s1 = inlined_call_operand.vmem [shape: bf16[2,16,16], index: 1, kind: input, shape index: {}]
  %s2 = inlined_call_operand.vmem [shape: bf16[2,16,16], index: 2, kind: input, shape index: {}]
  %s3 = inlined_call_operand.vmem [shape: f32[2,3,3,16], index: 3, kind: input, shape index: {}]
  %s4 = inlined_call_operand.hbm [shape: bf16[2,3,16,16], index: 4, kind: output, shape index: {}]
  %s5 = sld [smem:[#allocation0]]
  $region53: #{tpu_custom_call.1} parent=0
    _
  %s7 = ssub.s32 1, %s5
  %s8 = scalar_select 0, %s7, %s5
  $region1: #{tpu_custom_call.1} parent=0
    #allocation2 [shape = 'u8[49152]{0}', space=vmem, size = 0xc000, scoped, tag = 'input window, operand 0']
    #allocation3 [shape = 's32[2]{0}', space=sflag, size = 0x8, scoped, tag = 'scoped memory for tpu_custom_call.1']
    #allocation4 [shape = 's32[2]{0}', space=sflag, size = 0x8, scoped, tag = 'scoped memory for tpu_custom_call.1']
    #allocation5 [shape = 'u8[24576]{0}', space=vmem, size = 0x6000, scoped, tag = 'output window, operand 0']
    %9 = vsyncpa [#allocation3], 0
    %s10 = scalar_lea.sflag [#allocation3], 1
    %11 = vsyncpa %s10, 0
    %12 = vsyncpa [#allocation4], 0
    %s13 = scalar_lea.sflag [#allocation4], 1
    %14 = vsyncpa %s13, 0
    loop: start=0, step=1, limit=4
    $region2: #{tpu_custom_call.1} parent=1 // loop_pre_header
      _
    $region3: #{tpu_custom_call.1} parent=1 // loop_header
      %s16 = sphi 0, %s20
      %p17 = scmp.ge.s32.totalorder %s16, 4
      %s26 = sphi 0, %s28
      %s29 = sphi 0, %s26
      %s30 = sphi 0, %s29
      %s46 = sphi 0, %s30
      %s52 = sphi 0, %s54
      %s55 = sphi 0, %s52
      %s56 = sphi 0, %s55
      %s72 = sphi 0, %s56
      %s78 = sphi 0, %s80
      %s81 = sphi 0, %s78
      %s82 = sphi 0, %s81
      %s98 = sphi 0, %s82
      %s104 = sphi 0, %s106
      %s107 = sphi 0, %s104
      %s108 = sphi 0, %s107
      %s124 = sphi 0, %s108
      %s130 = sphi 0, %s132
      %s133 = sphi 0, %s130
      %s134 = sphi 0, %s133
      %s150 = sphi 0, %s134
    $region4: #{tpu_custom_call.1} parent=1 // loop_header_branch
      %19 = sbr.rel (%p17) target = $region8
    $region5: #{tpu_custom_call.1} parent=1 // loop_body
      %s21 = ssub.s32 %s16, 1
      %s22 = ssub.s32 %s16, 2
      %s23 = sadd.s32 %s16, 1
      %s24 = ssub.s32 %s16, %s23
      %p25 = scmp.eq.s32.totalorder %s24, 0
      %s27 = sadd.s32 %s26, 1
      %s28 = scalar_select %p25, %s26, %s27
      %p31 = pneg %p25
      %p32 = scmp.eq.s32.totalorder %s16, 1
      %p33 = por %p31, %p32
      %p34 = scmp.ne.s32.totalorder %s26, %s29
      %p35 = scmp.eq.s32.totalorder %s16, 0
      %p36 = por %p34, %p35
      %p37 = scmp.ne.s32.totalorder %s26, %s29
      %p38 = scmp.eq.s32.totalorder %s21, 1
      %p39 = por %p37, %p38
      %p40 = scmp.ne.s32.totalorder %s29, %s30
      %p41 = scmp.eq.s32.totalorder %s21, 0
      %p42 = por %p40, %p41
      %p43 = scmp.ne.s32.totalorder %s29, %s30
      %p44 = scmp.eq.s32.totalorder %s22, 1
      %p45 = por %p43, %p44
      %p47 = scmp.ne.s32.totalorder %s30, %s46
      %p48 = scmp.eq.s32.totalorder %s22, 0
      %p49 = por %p47, %p48
      %s50 = ssub.s32 %s16, %s23
      %p51 = scmp.eq.s32.totalorder %s50, 0
      %s53 = sadd.s32 %s52, 1
      %s54 = scalar_select %p51, %s52, %s53
      %p57 = pneg %p51
      %p58 = scmp.eq.s32.totalorder %s16, 1
      %p59 = por %p57, %p58
      %p60 = scmp.ne.s32.totalorder %s52, %s55
      %p61 = scmp.eq.s32.totalorder %s16, 0
      %p62 = por %p60, %p61
      %p63 = scmp.ne.s32.totalorder %s52, %s55
      %p64 = scmp.eq.s32.totalorder %s21, 1
      %p65 = por %p63, %p64
      %p66 = scmp.ne.s32.totalorder %s55, %s56
      %p67 = scmp.eq.s32.totalorder %s21, 0
      %p68 = por %p66, %p67
      %p69 = scmp.ne.s32.totalorder %s55, %s56
      %p70 = scmp.eq.s32.totalorder %s22, 1
      %p71 = por %p69, %p70
      %p73 = scmp.ne.s32.totalorder %s56, %s72
      %p74 = scmp.eq.s32.totalorder %s22, 0
      %p75 = por %p73, %p74
      %s76 = ssub.s32 %s16, %s23
      %p77 = scmp.eq.s32.totalorder %s76, 0
      %s79 = sadd.s32 %s78, 1
      %s80 = scalar_select %p77, %s78, %s79
      %p83 = pneg %p77
      %p84 = scmp.eq.s32.totalorder %s16, 1
      %p85 = por %p83, %p84
      %p86 = scmp.ne.s32.totalorder %s78, %s81
      %p87 = scmp.eq.s32.totalorder %s16, 0
      %p88 = por %p86, %p87
      %p89 = scmp.ne.s32.totalorder %s78, %s81
      %p90 = scmp.eq.s32.totalorder %s21, 1
      %p91 = por %p89, %p90
      %p92 = scmp.ne.s32.totalorder %s81, %s82
      %p93 = scmp.eq.s32.totalorder %s21, 0
      %p94 = por %p92, %p93
      %p95 = scmp.ne.s32.totalorder %s81, %s82
      %p96 = scmp.eq.s32.totalorder %s22, 1
      %p97 = por %p95, %p96
      %p99 = scmp.ne.s32.totalorder %s82, %s98
      %p100 = scmp.eq.s32.totalorder %s22, 0
      %p101 = por %p99, %p100
      %s102 = ssub.s32 %s16, %s23
      %p103 = scmp.eq.s32.totalorder %s102, 0
      %s105 = sadd.s32 %s104, 1
      %s106 = scalar_select %p103, %s104, %s105
      %p109 = pneg %p103
      %p110 = scmp.eq.s32.totalorder %s16, 1
      %p111 = por %p109, %p110
      %p112 = scmp.ne.s32.totalorder %s104, %s107
      %p113 = scmp.eq.s32.totalorder %s16, 0
      %p114 = por %p112, %p113
      %p115 = scmp.ne.s32.totalorder %s104, %s107
      %p116 = scmp.eq.s32.totalorder %s21, 1
      %p117 = por %p115, %p116
      %p118 = scmp.ne.s32.totalorder %s107, %s108
      %p119 = scmp.eq.s32.totalorder %s21, 0
      %p120 = por %p118, %p119
      %p121 = scmp.ne.s32.totalorder %s107, %s108
      %p122 = scmp.eq.s32.totalorder %s22, 1
      %p123 = por %p121, %p122
      %p125 = scmp.ne.s32.totalorder %s108, %s124
      %p126 = scmp.eq.s32.totalorder %s22, 0
      %p127 = por %p125, %p126
      %s128 = ssub.s32 %s16, %s23
      %p129 = scmp.eq.s32.totalorder %s128, 0
      %s131 = sadd.s32 %s130, 1
      %s132 = scalar_select %p129, %s130, %s131
      %p135 = pneg %p129
      %p136 = scmp.eq.s32.totalorder %s16, 1
      %p137 = por %p135, %p136
      %p138 = scmp.ne.s32.totalorder %s130, %s133
      %p139 = scmp.eq.s32.totalorder %s16, 0
      %p140 = por %p138, %p139
      %p141 = scmp.ne.s32.totalorder %s130, %s133
      %p142 = scmp.eq.s32.totalorder %s21, 1
      %p143 = por %p141, %p142
      %p144 = scmp.ne.s32.totalorder %s133, %s134
      %p145 = scmp.eq.s32.totalorder %s21, 0
      %p146 = por %p144, %p145
      %p147 = scmp.ne.s32.totalorder %s133, %s134
      %p148 = scmp.eq.s32.totalorder %s22, 1
      %p149 = por %p147, %p148
      %p151 = scmp.ne.s32.totalorder %s134, %s150
      %p152 = scmp.eq.s32.totalorder %s22, 0
      %p153 = por %p151, %p152
      %p154 = scmp.le.s32.totalorder 1, %s16
      %p155 = scmp.lt.s32.totalorder %s16, 3
      %p156 = pnand %p154, %p155
      %p157 = pneg %p156
      // Predicated region
      $region9: #{tpu_custom_call.1} parent=5 // pred_check
        _
      $region10: #{tpu_custom_call.1} parent=5 // pred_check_branch
        %159 = sbr.rel (%p156) target = $region12
      $region11: #{tpu_custom_call.1} parent=5 // pred_region
        %s160 = ssub.s32 %s16, 1
      $region12: #{tpu_custom_call.1} parent=5 // pred_fallthru
        _
      %p161 = scmp.lt.s32.totalorder %s16, 2
      // Predicated region
      $region13: #{tpu_custom_call.1} parent=5 // pred_check
        %p162 = pneg %p161
      $region14: #{tpu_custom_call.1} parent=5 // pred_check_branch
        %164 = sbr.rel (%p162) target = $region16
      $region15: #{tpu_custom_call.1} parent=5 // pred_region
        // Predicated region
        $region17: #{tpu_custom_call.1} parent=15 // pred_check
          %p165 = pneg %p36
        $region18: #{tpu_custom_call.1} parent=15 // pred_check_branch
          %167 = sbr.rel (%p165) target = $region20
        $region19: #{tpu_custom_call.1} parent=15 // pred_region
          %s168 = sand.u32 %s26, 1
          %s169 = scalar_lea.sflag [#allocation3], %s168
          %s170 = sand.u32 %s26, 1
          %s171 = smul.addr %s170, 48
          %s172 = scalar_lea.vmem [#allocation2], %s171
          %174 = vsyncadd %s169, 0
          %s175 = smul.addr %s16, 6
          %s176 = smul.addr %s175, 8
          %s177 = scalar_lea.hbm %s0, %s176
          %s178 = sshll.u32 %s177, 4
          %s179 = int_to_ptr.hbm [resolvable:$true] %s178
          %s180 = sshll.u32 %s172, 4
          %s181 = int_to_ptr.vmem [resolvable:$true] %s180
          %186 = dma.hbm_to_vmem [thread:$0]  %s179, 768, %s181, %s169, 128, 128, 8
        $region20: #{tpu_custom_call.1} parent=15 // pred_fallthru
          _
        // Predicated region
        $region21: #{tpu_custom_call.1} parent=15 // pred_check
          %p187 = pneg %p62
        $region22: #{tpu_custom_call.1} parent=15 // pred_check_branch
          %189 = sbr.rel (%p187) target = $region24
        $region23: #{tpu_custom_call.1} parent=15 // pred_region
          %p190 = scmp.lt.s32.totalorder %s16, 1
          %s191 = scalar_select %p190, %s16, 1
          %s192 = smul.addr %s191, 2
          %s193 = smul.addr %s192, 4
          %s194 = scalar_lea.vmem %s1, %s193
        $region24: #{tpu_custom_call.1} parent=15 // pred_fallthru
          _
        // Predicated region
        $region25: #{tpu_custom_call.1} parent=15 // pred_check
          %p195 = pneg %p88
        $region26: #{tpu_custom_call.1} parent=15 // pred_check_branch
          %197 = sbr.rel (%p195) target = $region28
        $region27: #{tpu_custom_call.1} parent=15 // pred_region
          %p198 = scmp.lt.s32.totalorder %s16, 1
          %s199 = scalar_select %p198, %s16, 1
          %s200 = smul.addr %s199, 2
          %s201 = smul.addr %s200, 4
          %s202 = scalar_lea.vmem %s2, %s201
        $region28: #{tpu_custom_call.1} parent=15 // pred_fallthru
          _
        // Predicated region
        $region29: #{tpu_custom_call.1} parent=15 // pred_check
          %p203 = pneg %p114
        $region30: #{tpu_custom_call.1} parent=15 // pred_check_branch
          %205 = sbr.rel (%p203) target = $region32
        $region31: #{tpu_custom_call.1} parent=15 // pred_region
          %p206 = scmp.lt.s32.totalorder %s16, 1
          %s207 = scalar_select %p206, %s16, 1
          %s208 = smul.addr %s207, 3
          %s209 = smul.addr %s208, 4
          %s210 = scalar_lea.vmem %s3, %s209
        $region32: #{tpu_custom_call.1} parent=15 // pred_fallthru
          _
      $region16: #{tpu_custom_call.1} parent=5 // pred_fallthru
        _
      %p211 = scmp.le.s32.totalorder 1, %s16
      %p212 = scmp.lt.s32.totalorder %s16, 3
      %p213 = pnand %p211, %p212
      %p214 = pneg %p213
      // Predicated region
      $region33: #{tpu_custom_call.1} parent=5 // pred_check
        _
      $region34: #{tpu_custom_call.1} parent=5 // pred_check_branch
        %216 = sbr.rel (%p213) target = $region36
      $region35: #{tpu_custom_call.1} parent=5 // pred_region
        %s217 = ssub.s32 %s16, 1
        %s218 = sand.u32 %s29, 1
        %s219 = scalar_lea.sflag [#allocation3], %s218
        %s220 = sand.u32 %s29, 1
        %s221 = smul.addr %s220, 48
        %s222 = scalar_lea.vmem [#allocation2], %s221
        // Predicated region
        $region37: #{tpu_custom_call.1} parent=35 // pred_check
          %p223 = pneg %p42
        $region38: #{tpu_custom_call.1} parent=35 // pred_check_branch
          %225 = sbr.rel (%p223) target = $region40
        $region39: #{tpu_custom_call.1} parent=35 // pred_region
          %227 = dma.done %s219, 768
        $region40: #{tpu_custom_call.1} parent=35 // pred_fallthru
          _
        %s228 = sand.u32 %s29, 1
        %s229 = scalar_lea.sflag [#allocation3], %s228
        %s230 = sand.u32 %s29, 1
        %s231 = smul.addr %s230, 48
        %s232 = scalar_lea.vmem [#allocation2], %s231
        %p233 = pneg %p42
        %p234 = pneg %p39
        %p235 = scmp.lt.s32.totalorder %s21, 1
        %s236 = scalar_select %p235, %s21, 1
        %s237 = smul.addr %s236, 2
        %s238 = smul.addr %s237, 4
        %s239 = scalar_lea.vmem %s1, %s238
        %p240 = pneg %p68
        %p241 = pneg %p65
        %p242 = scmp.lt.s32.totalorder %s21, 1
        %s243 = scalar_select %p242, %s21, 1
        %s244 = smul.addr %s243, 2
        %s245 = smul.addr %s244, 4
        %s246 = scalar_lea.vmem %s2, %s245
        %p247 = pneg %p94
        %p248 = pneg %p91
        %p249 = scmp.lt.s32.totalorder %s21, 1
        %s250 = scalar_select %p249, %s21, 1
        %s251 = smul.addr %s250, 3
        %s252 = smul.addr %s251, 4
        %s253 = scalar_lea.vmem %s3, %s252
        %p254 = pneg %p120
        %p255 = pneg %p117
        %p256 = pneg %p146
        %p257 = pneg %p143
        %s258 = sand.u32 %s133, 1
        %s259 = scalar_lea.sflag [#allocation4], %s258
        %s260 = sand.u32 %s133, 1
        %s261 = smul.addr %s260, 24
        %s262 = scalar_lea.vmem [#allocation5], %s261
        %p263 = scmp.lt.s32.totalorder %s21, 1
        %s264 = scalar_select %p263, %s21, 1
        %s265 = smul.addr %s264, 2
        %s266 = smul.addr %s265, 4
        %s267 = scalar_lea.vmem %s1, %s266
        %p268 = scmp.lt.s32.totalorder %s21, 1
        %s269 = scalar_select %p268, %s21, 1
        %s270 = smul.addr %s269, 2
        %s271 = smul.addr %s270, 4
        %s272 = scalar_lea.vmem %s2, %s271
        %p273 = scmp.lt.s32.totalorder %s21, 1
        %s274 = scalar_select %p273, %s21, 1
        %s275 = smul.addr %s274, 3
        %s276 = smul.addr %s275, 4
        %s277 = scalar_lea.vmem %s3, %s276
        %v279 = vld [vmem:[%s267] sm:$0xf]
        %v280 = vld [vmem:[%s267 + $0x4] sm:$0xf]
        %v281 = vld [vmem:[%s272] sm:$0xf]
        %v282 = vld [vmem:[%s272 + $0x4] sm:$0xf]
        %v283 = vld [vmem:[%s222] sm:$0xff]
        %v284 = vld [vmem:[%s222 + $0x8] sm:$0xff]
        %v285 = vpack.c.bf16 %v283, %v283
        %v286 = vpack.c.bf16 %v284, %v284
        %v289 = vunpack.c.l.b16 %v285
        %v290 = vunpack.c.l.b16 %v286
        %v291 = vpack.c.b16 %v290, %v289
        %v294 = vunpack.c.l.b16 %v279
        %v295 = vunpack.c.l.b16 %v280
        %v296 = vpack.c.b16 %v295, %v294
        %vm298 = vcmask 130048
        %v300 = vsel %vm298, %v291, 0
        %302 = vmatpush.bf16.msra.mxu0 0
        %303 = vmatpush.bf16.msra.mxu0 0
        %304 = vmatpush.bf16.msra.mxu0 0
        %305 = vmatpush.bf16.msra.mxu0 0
        %306 = vmatpush.bf16.msra.mxu0 0
        %307 = vmatpush.bf16.msra.mxu0 0
        %308 = vmatpush.bf16.msra.mxu0 0
        %309 = vmatpush.bf16.msra.mxu0 %v296
        %310 = vmatmul.bf16.gmra.mxu0 %v300
        %v311 = vpop.f32.mrf.mxu0
        %v312 = vadd.f32 0.0, %v311
        %v313 = vpop.f32.mrf.mxu0
        %v314 = vadd.f32 0.0, %v313
        %315 = vdwg.mxu0
        %v316 = vpack.c.bf16 %v312, %v312
        %v317 = vpack.c.bf16 %v314, %v314
        %v320 = vunpack.c.l.b16 %v281
        %v321 = vunpack.c.l.b16 %v282
        %v322 = vpack.c.b16 %v321, %v320
        %v325 = vunpack.c.l.b16 %v316
        %v326 = vunpack.c.l.b16 %v317
        %v327 = vpack.c.b16 %v326, %v325
        %v330 = vsel %vm298, %v322, 0
        %332 = vmatpush.bf16.msra.mxu0 0
        %333 = vmatpush.bf16.msra.mxu0 0
        %334 = vmatpush.bf16.msra.mxu0 0
        %335 = vmatpush.bf16.msra.mxu0 0
        %336 = vmatpush.bf16.msra.mxu0 0
        %337 = vmatpush.bf16.msra.mxu0 0
        %338 = vmatpush.bf16.msra.mxu0 0
        %339 = vmatpush.bf16.msra.mxu0 %v327
        %340 = vmatmul.bf16.gmra.mxu0 %v330
        %v341 = vpop.f32.mrf.mxu0
        %v342 = vadd.f32 0.0, %v341
        %v343 = vpop.f32.mrf.mxu0
        %v344 = vadd.f32 0.0, %v343
        %345 = vdwg.mxu0
        %v346 = vld [vmem:[%s277] sm:$0x7]
        %v347 = vperm.slane %v346, 0
        %v348 = vmul.f32 %v342, %v347
        %v349 = vmul.f32 %v344, %v347
        %v350 = vperm.slane %v346, 1
        %v351 = vadd.f32 %v348, %v350
        %v352 = vadd.f32 %v349, %v350
        %v353 = vperm.slane %v346, 2
        %v354 = vmax.f32 %v351, %v353
        %v355 = vmax.f32 %v352, %v353
        %v356 = vpack.c.bf16 %v354, %v354
        %v357 = vpack.c.bf16 %v355, %v355
        %vm358 = vcmask 125952
        %359 = vst.msk [vmem:[%s262] sm:$0xf] %vm358, %v356
        %360 = vst.msk [vmem:[%s262 + $0x4] sm:$0xf] %vm358, %v357
        %s361 = scalar_lea.vmem %s222, 16 [#allocation2]
        %v362 = vld [vmem:[%s361] sm:$0xff]
        %v363 = vld [vmem:[%s361 + $0x8] sm:$0xff]
        %v364 = vpack.c.bf16 %v362, %v362
        %v365 = vpack.c.bf16 %v363, %v363
        %v368 = vunpack.c.l.b16 %v364
        %v369 = vunpack.c.l.b16 %v365
        %v370 = vpack.c.b16 %v369, %v368
        %v372 = vsel %vm298, %v370, 0
        %374 = vmatpush.bf16.msra.mxu0 0
        %375 = vmatpush.bf16.msra.mxu0 0
        %376 = vmatpush.bf16.msra.mxu0 0
        %377 = vmatpush.bf16.msra.mxu0 0
        %378 = vmatpush.bf16.msra.mxu0 0
        %379 = vmatpush.bf16.msra.mxu0 0
        %380 = vmatpush.bf16.msra.mxu0 0
        %381 = vmatpush.bf16.msra.mxu0 %v296
        %382 = vmatmul.bf16.gmra.mxu0 %v372
        %v383 = vpop.f32.mrf.mxu0
        %v384 = vadd.f32 0.0, %v383
        %v385 = vpop.f32.mrf.mxu0
        %v386 = vadd.f32 0.0, %v385
        %387 = vdwg.mxu0
        %v388 = vpack.c.bf16 %v384, %v384
        %v389 = vpack.c.bf16 %v386, %v386
        %v392 = vunpack.c.l.b16 %v388
        %v393 = vunpack.c.l.b16 %v389
        %v394 = vpack.c.b16 %v393, %v392
        %396 = vmatpush.bf16.msra.mxu0 0
        %397 = vmatpush.bf16.msra.mxu0 0
        %398 = vmatpush.bf16.msra.mxu0 0
        %399 = vmatpush.bf16.msra.mxu0 0
        %400 = vmatpush.bf16.msra.mxu0 0
        %401 = vmatpush.bf16.msra.mxu0 0
        %402 = vmatpush.bf16.msra.mxu0 0
        %403 = vmatpush.bf16.msra.mxu0 %v394
        %404 = vmatmul.bf16.gmra.mxu0 %v330
        %v405 = vpop.f32.mrf.mxu0
        %v406 = vadd.f32 0.0, %v405
        %v407 = vpop.f32.mrf.mxu0
        %v408 = vadd.f32 0.0, %v407
        %409 = vdwg.mxu0
        %s410 = scalar_lea.vmem %s277, 4
        %v411 = vld [vmem:[%s410] sm:$0x7]
        %v412 = vperm.slane %v411, 0
        %v413 = vmul.f32 %v406, %v412
        %v414 = vmul.f32 %v408, %v412
        %v415 = vperm.slane %v411, 1
        %v416 = vadd.f32 %v413, %v415
        %v417 = vadd.f32 %v414, %v415
        %v418 = vperm.slane %v411, 2
        %v419 = vmax.f32 %v416, %v418
        %v420 = vmax.f32 %v417, %v418
        %v421 = vpack.c.bf16 %v419, %v419
        %v422 = vpack.c.bf16 %v420, %v420
        %s423 = scalar_lea.vmem %s262, 8 [#allocation5]
        %424 = vst.msk [vmem:[%s423] sm:$0xf] %vm358, %v421
        %425 = vst.msk [vmem:[%s423 + $0x4] sm:$0xf] %vm358, %v422
        %s426 = scalar_lea.vmem %s222, 32 [#allocation2]
        %v427 = vld [vmem:[%s426] sm:$0xff]
        %v428 = vld [vmem:[%s426 + $0x8] sm:$0xff]
        %v429 = vpack.c.bf16 %v427, %v427
        %v430 = vpack.c.bf16 %v428, %v428
        %v433 = vunpack.c.l.b16 %v429
        %v434 = vunpack.c.l.b16 %v430
        %v435 = vpack.c.b16 %v434, %v433
        %v437 = vsel %vm298, %v435, 0
        %439 = vmatpush.bf16.msra.mxu0 0
        %440 = vmatpush.bf16.msra.mxu0 0
        %441 = vmatpush.bf16.msra.mxu0 0
        %442 = vmatpush.bf16.msra.mxu0 0
        %443 = vmatpush.bf16.msra.mxu0 0
        %444 = vmatpush.bf16.msra.mxu0 0
        %445 = vmatpush.bf16.msra.mxu0 0
        %446 = vmatpush.bf16.msra.mxu0 %v296
        %447 = vmatmul.bf16.gmra.mxu0 %v437
        %v448 = vpop.f32.mrf.mxu0
        %v449 = vadd.f32 0.0, %v448
        %v450 = vpop.f32.mrf.mxu0
        %v451 = vadd.f32 0.0, %v450
        %452 = vdwg.mxu0
        %v453 = vpack.c.bf16 %v449, %v449
        %v454 = vpack.c.bf16 %v451, %v451
        %v457 = vunpack.c.l.b16 %v453
        %v458 = vunpack.c.l.b16 %v454
        %v459 = vpack.c.b16 %v458, %v457
        %461 = vmatpush.bf16.msra.mxu0 0
        %462 = vmatpush.bf16.msra.mxu0 0
        %463 = vmatpush.bf16.msra.mxu0 0
        %464 = vmatpush.bf16.msra.mxu0 0
        %465 = vmatpush.bf16.msra.mxu0 0
        %466 = vmatpush.bf16.msra.mxu0 0
        %467 = vmatpush.bf16.msra.mxu0 0
        %468 = vmatpush.bf16.msra.mxu0 %v459
        %469 = vmatmul.bf16.gmra.mxu0 %v330
        %v470 = vpop.f32.mrf.mxu0
        %v471 = vadd.f32 0.0, %v470
        %v472 = vpop.f32.mrf.mxu0
        %v473 = vadd.f32 0.0, %v472
        %474 = vdwg.mxu0
        %s475 = scalar_lea.vmem %s277, 8
        %v476 = vld [vmem:[%s475] sm:$0x7]
        %v477 = vperm.slane %v476, 0
        %v478 = vmul.f32 %v471, %v477
        %v479 = vmul.f32 %v473, %v477
        %v480 = vperm.slane %v476, 1
        %v481 = vadd.f32 %v478, %v480
        %v482 = vadd.f32 %v479, %v480
        %v483 = vperm.slane %v476, 2
        %v484 = vmax.f32 %v481, %v483
        %v485 = vmax.f32 %v482, %v483
        %v486 = vpack.c.bf16 %v484, %v484
        %v487 = vpack.c.bf16 %v485, %v485
        %s488 = scalar_lea.vmem %s262, 16 [#allocation5]
        %489 = vst.msk [vmem:[%s488] sm:$0xf] %vm358, %v486
        %490 = vst.msk [vmem:[%s488 + $0x4] sm:$0xf] %vm358, %v487
        %s491 = sand.u32 %s133, 1
        %s492 = scalar_lea.sflag [#allocation4], %s491
        %s493 = sand.u32 %s133, 1
        %s494 = smul.addr %s493, 24
        %s495 = scalar_lea.vmem [#allocation5], %s494
        // Predicated region
        $region41: #{tpu_custom_call.1} parent=35 // pred_check
          %p496 = pneg %p143
        $region42: #{tpu_custom_call.1} parent=35 // pred_check_branch
          %498 = sbr.rel (%p496) target = $region44
        $region43: #{tpu_custom_call.1} parent=35 // pred_region
          %500 = vsyncadd %s492, 0
          %s501 = smul.addr %s21, 6
          %s502 = smul.addr %s501, 4
          %s503 = scalar_lea.hbm %s4, %s502
          %s504 = sshll.u32 %s495, 4
          %s505 = int_to_ptr.vmem [resolvable:$true] %s504
          %s506 = sshll.u32 %s503, 4
          %s507 = int_to_ptr.hbm [resolvable:$true] %s506
          %512 = dma.vmem_to_hbm [thread:$0]  %s505, 384, %s507, %s492, 64, 64, 4
        $region44: #{tpu_custom_call.1} parent=35 // pred_fallthru
          _
      $region36: #{tpu_custom_call.1} parent=5 // pred_fallthru
        _
      %p513 = scmp.le.s32.totalorder 2, %s16
      // Predicated region
      $region45: #{tpu_custom_call.1} parent=5 // pred_check
        %p514 = pneg %p513
      $region46: #{tpu_custom_call.1} parent=5 // pred_check_branch
        %516 = sbr.rel (%p514) target = $region48
      $region47: #{tpu_custom_call.1} parent=5 // pred_region
        %s517 = ssub.s32 %s16, 2
        // Predicated region
        $region49: #{tpu_custom_call.1} parent=47 // pred_check
          %p518 = pneg %p149
        $region50: #{tpu_custom_call.1} parent=47 // pred_check_branch
          %520 = sbr.rel (%p518) target = $region52
        $region51: #{tpu_custom_call.1} parent=47 // pred_region
          %s521 = sand.u32 %s134, 1
          %s522 = scalar_lea.sflag [#allocation4], %s521
          %s523 = sand.u32 %s134, 1
          %s524 = smul.addr %s523, 24
          %s525 = scalar_lea.vmem [#allocation5], %s524
          %527 = dma.done %s522, 384
        $region52: #{tpu_custom_call.1} parent=47 // pred_fallthru
          _
      $region48: #{tpu_custom_call.1} parent=5 // pred_fallthru
        _
    $region6: #{tpu_custom_call.1} parent=1 // loop_footer
      %s20 = sadd.s32 1, %s16
    $region7: #{tpu_custom_call.1} parent=1 // loop_footer_branch
      %15 = sbr.rel target = $region3
    $region8: #{tpu_custom_call.1} parent=1 // loop_exit
      _
    %528 = vsyncpa [#allocation3], 1
    %s529 = scalar_lea.sflag [#allocation3], 1
    %530 = vsyncpa %s529, 1
    %531 = vsyncpa [#allocation4], 1
    %s532 = scalar_lea.sflag [#allocation4], 1
    %533 = vsyncpa %s532, 1

</llo_original>
